<compile_context>
chip_gen: v7x
topology: tpu7x:2x2x1
jax: 0.10.0
libtpu: 0.0.40
codegen_flags: <defaults>
</compile_context>

<pallas_src>
import jax
import jax.numpy as jnp
from jax import lax
from jax.experimental import pallas as pl
from jax.experimental.pallas import tpu as pltpu

BN_EPS = 1e-5
LRELU_SLOPE = 0.1
LANE = 128


def _round_up(x, m):
    return ((x + m - 1) // m) * m


# ---------------- Pass 1: conv-as-GEMM + per-tile BN partial stats ----------------
def _gemm_stats_kernel(p_ref, w_ref, y_ref, sum_ref, sq_ref):
    # p_ref: (TM, Kd) bf16 im2col patches; w_ref: (Kd, Cp) bf16 (resident).
    y = jnp.dot(p_ref[...], w_ref[...], preferred_element_type=jnp.float32)
    y_ref[...] = y
    # Per-tile partial stats (zero-padded rows contribute exactly zero).
    sum_ref[...] = jnp.sum(y, axis=0, keepdims=True)[None]        # (1, 1, Cp)
    sq_ref[...] = jnp.sum(y * y, axis=0, keepdims=True)[None]     # (1, 1, Cp)


# ---------------- Pass 2: folded BN affine + LeakyReLU ----------------------------
def _bn_lrelu_kernel(y_ref, scale_ref, shift_ref, o_ref):
    z = y_ref[...] * scale_ref[...] + shift_ref[...]
    o_ref[...] = jnp.where(z > 0, z, LRELU_SLOPE * z)


def convolutional_forward(x, weight, gamma, beta, stride=1, padding=0):
    """x: (N, Cin, H, W) NCHW; weight: (Cout, Cin, K, K) OIHW (PyTorch convention)."""
    N, Cin, H, W = x.shape
    Cout, _, K, _ = weight.shape
    OH = (H + 2 * padding - K) // stride + 1
    OW = (W + 2 * padding - K) // stride + 1
    M = N * OH * OW
    Kd = Cin * K * K

    # ---- glue: im2col (channels-last so Cout lands on the lane axis) ----
    # TODO(synk): for large convs, replace the materialized im2col with in-kernel
    # tap-wise (TM, Cin) @ (Cin, Cp) matmuls over an NHWC input to avoid the K*K
    # duplication of HBM traffic.
    x_p = jnp.pad(x, ((0, 0), (0, 0), (padding, padding), (padding, padding)))
    cols = [
        x_p[:, :, i : i + OH * stride : stride, j : j + OW * stride : stride]
        for i in range(K)
        for j in range(K)
    ]
    patches = jnp.stack(cols, axis=2)               # (N, Cin, K*K, OH, OW)
    patches = patches.transpose(0, 3, 4, 1, 2)      # (N, OH, OW, Cin, K*K)
    patches = patches.reshape(M, Kd)

    # ---- padding for lane-dense / tile-aligned blocks ----
    Cp = _round_up(Cout, LANE)                      # lane-dense output channels
    TM = 512 if M >= 512 else max(8, min(128, _round_up(M, 8)))
    Mp = _round_up(M, TM)
    n_tiles = Mp // TM

    patches_p = jnp.pad(patches, ((0, Mp - M), (0, 0))).astype(jnp.bfloat16)
    w_mat = jnp.pad(
        weight.reshape(Cout, Kd).T, ((0, 0), (0, Cp - Cout))
    ).astype(jnp.bfloat16)

    gemm_cost = pl.CostEstimate(
        flops=2 * Mp * Kd * Cp,
        transcendentals=0,
        bytes_accessed=(patches_p.size * 2 + w_mat.size * 2
                        + Mp * Cp * 4 + 2 * n_tiles * Cp * 4),
    )

    y, psum, psq = pl.pallas_call(
        _gemm_stats_kernel,
        out_shape=(
            jax.ShapeDtypeStruct((Mp, Cp), jnp.float32),
            jax.ShapeDtypeStruct((n_tiles, 1, Cp), jnp.float32),
            jax.ShapeDtypeStruct((n_tiles, 1, Cp), jnp.float32),
        ),
        grid=(n_tiles,),
        in_specs=[
            pl.BlockSpec((TM, Kd), lambda i: (i, 0)),
            pl.BlockSpec((Kd, Cp), lambda i: (0, 0)),
        ],
        out_specs=(
            pl.BlockSpec((TM, Cp), lambda i: (i, 0)),
            pl.BlockSpec((1, 1, Cp), lambda i: (i, 0, 0)),
            pl.BlockSpec((1, 1, Cp), lambda i: (i, 0, 0)),
        ),
        compiler_params=pltpu.CompilerParams(
            dimension_semantics=("parallel",),
            vmem_limit_bytes=32 * 1024 * 1024,
        ),
        cost_estimate=gemm_cost,
    )(patches_p, w_mat)

    # ---- tiny per-channel glue: global batch stats + folded BN scale/shift ----
    # Zero-padded rows / channels contribute nothing to the sums; divide by the
    # true element count M (biased variance, as PyTorch uses for normalization).
    mean = jnp.sum(psum, axis=(0, 1)) / M                               # (Cp,)
    var = jnp.maximum(jnp.sum(psq, axis=(0, 1)) / M - mean * mean, 0.0)  # (Cp,)
    gamma_p = jnp.pad(gamma.astype(jnp.float32), (0, Cp - Cout))
    beta_p = jnp.pad(beta.astype(jnp.float32), (0, Cp - Cout))
    scale_v = gamma_p * lax.rsqrt(var + BN_EPS)
    shift_v = beta_p - mean * scale_v
    scale = scale_v.reshape(1, Cp)
    shift = shift_v.reshape(1, Cp)

    out_p = pl.pallas_call(
        _bn_lrelu_kernel,
        out_shape=jax.ShapeDtypeStruct((Mp, Cp), jnp.float32),
        grid=(n_tiles,),
        in_specs=[
            pl.BlockSpec((TM, Cp), lambda i: (i, 0)),
            pl.BlockSpec((1, Cp), lambda i: (0, 0)),
            pl.BlockSpec((1, Cp), lambda i: (0, 0)),
        ],
        out_specs=pl.BlockSpec((TM, Cp), lambda i: (i, 0)),
        compiler_params=pltpu.CompilerParams(
            dimension_semantics=("parallel",),
            vmem_limit_bytes=32 * 1024 * 1024,
        ),
    )(y, scale, shift)

    # ---- glue: drop padding, back to NCHW (module convention) ----
    return out_p[:M, :Cout].reshape(N, OH, OW, Cout).transpose(0, 3, 1, 2)


def _reference_forward(x, weight, gamma, beta, stride=1, padding=0,
                       compute_dtype=jnp.float32):
    """Pure-JAX reference matching PyTorch Conv2d + train-mode BN + LeakyReLU."""
    y = lax.conv_general_dilated(
        x.astype(compute_dtype),
        weight.astype(compute_dtype),
        window_strides=(stride, stride),
        padding=[(padding, padding), (padding, padding)],
        dimension_numbers=("NCHW", "OIHW", "NCHW"),
        preferred_element_type=jnp.float32,
    )
    mean = jnp.mean(y, axis=(0, 2, 3), keepdims=True)
    var = jnp.mean((y - mean) ** 2, axis=(0, 2, 3), keepdims=True)
    y = (y - mean) * lax.rsqrt(var + BN_EPS)
    y = y * gamma.reshape(1, -1, 1, 1) + beta.reshape(1, -1, 1, 1)
    return jnp.where(y > 0, y, LRELU_SLOPE * y)


if __name__ == "__main__":
    # Module config: Convolutional(in_channels=4, out_channels=8) with defaults
    # kernel_size=3, stride=1, padding=0.
    N, Cin, H, W = 2, 4, 16, 16
    Cout, K, stride, padding = 8, 3, 1, 0

    key = jax.random.PRNGKey(0)
    kx, kw, kg, kb = jax.random.split(key, 4)

    x = jax.random.normal(kx, (N, Cin, H, W), dtype=jnp.float32)
    weight = jax.random.normal(kw, (Cout, Cin, K, K), dtype=jnp.float32) * 0.1
    gamma = 1.0 + 0.1 * jax.random.normal(kg, (Cout,), dtype=jnp.float32)
    beta = 0.1 * jax.random.normal(kb, (Cout,), dtype=jnp.float32)

    out = jax.block_until_ready(
        convolutional_forward(x, weight, gamma, beta, stride=stride, padding=padding)
    )
    assert out.shape == (N, Cout, H - K + 1, W - K + 1)

    # Check 1: against a reference using the same bf16 MXU input precision
    # (differences are accumulation-order only) -> tight tolerance.
    ref_bf16 = jax.block_until_ready(
        _reference_forward(x, weight, gamma, beta, stride=stride, padding=padding,
                           compute_dtype=jnp.bfloat16)
    )
    assert jnp.allclose(out, ref_bf16, rtol=2e-3, atol=2e-3)

    # Check 2: against the full-f32 reference; tolerance reflects bf16 rounding
    # (~2^-8 relative) of the GEMM inputs.
    ref_f32 = jax.block_until_ready(
        _reference_forward(x, weight, gamma, beta, stride=stride, padding=padding)
    )
    assert jnp.allclose(out, ref_f32, rtol=2e-2, atol=2e-2)

    print("KERNEL_OK")
</pallas_src>

<mosaic_0001>
module attributes {stable_mosaic.version = 11 : i64} {
  func.func @_gemm_stats_kernel(%arg0: i32, %arg1: memref<128x36xbf16, #tpu.memory_space<vmem>>, %arg2: memref<36x128xbf16, #tpu.memory_space<vmem>>, %arg3: memref<128x128xf32, #tpu.memory_space<vmem>>, %arg4: memref<1x1x128xf32, #tpu.memory_space<vmem>>, %arg5: memref<1x1x128xf32, #tpu.memory_space<vmem>>) attributes {dimension_semantics = [#tpu.dimension_semantics<parallel>], iteration_bounds = array<i64: 4>, scalar_prefetch = 0 : i64, scratch_operands = 0 : i64, tpu.core_type = #tpu.core_type<tc>, window_params = [{transform_indices = @transform_0, window_bounds = array<i64: 128, 36>}, {pipeline_mode = #tpu.pipeline_mode<synchronous>, transform_indices = @transform_1, window_bounds = array<i64: 36, 128>}, {transform_indices = @transform_2, window_bounds = array<i64: 128, 128>}, {transform_indices = @transform_3, window_bounds = array<i64: 1, 1, 128>}, {transform_indices = @transform_4, window_bounds = array<i64: 1, 1, 128>}]} {
    %c0 = arith.constant 0 : index
    %c0_0 = arith.constant 0 : index
    %0 = vector.load %arg1[%c0, %c0_0] : memref<128x36xbf16, #tpu.memory_space<vmem>>, vector<128x36xbf16>
    %c0_1 = arith.constant 0 : index
    %c0_2 = arith.constant 0 : index
    %1 = vector.load %arg2[%c0_1, %c0_2] : memref<36x128xbf16, #tpu.memory_space<vmem>>, vector<36x128xbf16>
    %cst = arith.constant dense<0.000000e+00> : vector<128x128xf32>
    %2 = tpu.matmul %0, %1, %cst {dimension_numbers = #tpu.dot_dimension_numbers<[1], [0], [0], [1], [0, 0, 1, 1], [], []>} : vector<128x36xbf16>, vector<36x128xbf16>, vector<128x128xf32> -> vector<128x128xf32>
    %c0_3 = arith.constant 0 : index
    %c0_4 = arith.constant 0 : index
    %3 = vector.load %arg3[%c0_3, %c0_4] : memref<128x128xf32, #tpu.memory_space<vmem>>, vector<128x128xf32>
    tpu.vector_store %arg3[%c0_3, %c0_4], %2 {strides = array<i32>} : memref<128x128xf32, #tpu.memory_space<vmem>>, vector<128x128xf32>,
    %cst_5 = arith.constant dense<0.000000e+00> : vector<128xf32>
    %4 = vector.multi_reduction <add>, %2, %cst_5 [0] : vector<128x128xf32> to vector<128xf32>
    %5 = vector.shape_cast %4 : vector<128xf32> to vector<1x128xf32>
    %6 = vector.shape_cast %5 : vector<1x128xf32> to vector<1x1x128xf32>
    %c0_6 = arith.constant 0 : index
    %c0_7 = arith.constant 0 : index
    %c0_8 = arith.constant 0 : index
    %7 = vector.load %arg4[%c0_6, %c0_7, %c0_8] : memref<1x1x128xf32, #tpu.memory_space<vmem>>, vector<1x1x128xf32>
    tpu.vector_store %arg4[%c0_6, %c0_7, %c0_8], %6 {strides = array<i32>} : memref<1x1x128xf32, #tpu.memory_space<vmem>>, vector<1x1x128xf32>,
    %8 = arith.mulf %2, %2 : vector<128x128xf32>
    %cst_9 = arith.constant dense<0.000000e+00> : vector<128xf32>
    %9 = vector.multi_reduction <add>, %8, %cst_9 [0] : vector<128x128xf32> to vector<128xf32>
    %10 = vector.shape_cast %9 : vector<128xf32> to vector<1x128xf32>
    %11 = vector.shape_cast %10 : vector<1x128xf32> to vector<1x1x128xf32>
    %c0_10 = arith.constant 0 : index
    %c0_11 = arith.constant 0 : index
    %c0_12 = arith.constant 0 : index
    %12 = vector.load %arg5[%c0_10, %c0_11, %c0_12] : memref<1x1x128xf32, #tpu.memory_space<vmem>>, vector<1x1x128xf32>
    tpu.vector_store %arg5[%c0_10, %c0_11, %c0_12], %11 {strides = array<i32>} : memref<1x1x128xf32, #tpu.memory_space<vmem>>, vector<1x1x128xf32>,
    return
  }
  func.func @transform_0(%arg0: i32) -> (i32, i32) {
    %c0_i32 = arith.constant 0 : i32
    %c0_i32_0 = arith.constant 0 : i32
    return %arg0, %c0_i32 : i32, i32
  }
  func.func @transform_1(%arg0: i32) -> (i32, i32) {
    %c0_i32 = arith.constant 0 : i32
    %c0_i32_0 = arith.constant 0 : i32
    %c0_i32_1 = arith.constant 0 : i32
    return %c0_i32, %c0_i32_0 : i32, i32
  }
  func.func @transform_2(%arg0: i32) -> (i32, i32) {
    %c0_i32 = arith.constant 0 : i32
    %c0_i32_0 = arith.constant 0 : i32
    return %arg0, %c0_i32 : i32, i32
  }
  func.func @transform_3(%arg0: i32) -> (i32, i32, i32) {
    %c0_i32 = arith.constant 0 : i32
    %c0_i32_0 = arith.constant 0 : i32
    %c0_i32_1 = arith.constant 0 : i32
    return %arg0, %c0_i32, %c0_i32_0 : i32, i32, i32
  }
  func.func @transform_4(%arg0: i32) -> (i32, i32, i32) {
    %c0_i32 = arith.constant 0 : i32
    %c0_i32_0 = arith.constant 0 : i32
    %c0_i32_1 = arith.constant 0 : i32
    return %arg0, %c0_i32, %c0_i32_0 : i32, i32, i32
  }
}

</mosaic_0001>

<llo_original>
// kernel: tpu_custom_call.1
$region0: #{tpu_custom_call.1}
  #allocation0 [shape = 'u32[]', space=smem, size = 0x4, offset = 0x4, fixed_abs, tag = 'smem constant byte address 0x4 - core index']
  #allocation1 [shape = 'u32[144,128]{1,0:T(1,128)}', space=vmem, size = 0x12000, scoped, tag = 'internal scratch']
  %s0 = inlined_call_operand.vmem [shape: bf16[512,36], index: 0, kind: input, shape index: {}]
  %s1 = inlined_call_operand.vmem [shape: bf16[36,128], index: 1, kind: input, shape index: {}]
  %s2 = inlined_call_operand.hbm [shape: f32[512,128], index: 2, kind: output, shape index: {0}]
  %s3 = inlined_call_operand.hbm [shape: f32[4,1,128], index: 3, kind: output, shape index: {1}]
  %s4 = inlined_call_operand.hbm [shape: f32[4,1,128], index: 4, kind: output, shape index: {2}]
  %5 = xla_tuple %s2, %s3, %s4
  %s6 = sld [smem:[#allocation0]]
  $region57: #{tpu_custom_call.1} parent=0
    _
  %s8 = ssub.s32 1, %s6
  %s9 = scalar_select 0, %s8, %s6
  $region1: #{tpu_custom_call.1} parent=0
    #allocation2 [shape = 'u8[131072]{0}', space=vmem, size = 0x20000, scoped, tag = 'output window, operand 0']
    #allocation3 [shape = 's32[2]{0}', space=sflag, size = 0x8, scoped, tag = 'scoped memory for tpu_custom_call.1']
    #allocation4 [shape = 'u8[1024]{0}', space=vmem, size = 0x400, scoped, tag = 'output window, operand 1']
    #allocation5 [shape = 's32[2]{0}', space=sflag, size = 0x8, scoped, tag = 'scoped memory for tpu_custom_call.1']
    #allocation6 [shape = 'u8[1024]{0}', space=vmem, size = 0x400, scoped, tag = 'output window, operand 2']
    %10 = vsyncpa [#allocation3], 0
    %s11 = scalar_lea.sflag [#allocation3], 1
    %12 = vsyncpa %s11, 0
    %13 = vsyncpa [#allocation5], 0
    %s14 = scalar_lea.sflag [#allocation5], 1
    %15 = vsyncpa %s14, 0
    loop: start=0, step=1, limit=6
    $region2: #{tpu_custom_call.1} parent=1 // loop_pre_header
      _
    $region3: #{tpu_custom_call.1} parent=1 // loop_header
      %s17 = sphi 0, %s21
      %p18 = scmp.ge.s32.totalorder %s17, 6
      %s27 = sphi 0, %s29
      %s30 = sphi 0, %s27
      %s31 = sphi 0, %s30
      %s47 = sphi 0, %s31
      %s51 = sphi 0, %s51
      %s53 = sphi 0, %s51
      %s54 = sphi 0, %s53
      %s68 = sphi 0, %s54
      %s74 = sphi 0, %s76
      %s77 = sphi 0, %s74
      %s78 = sphi 0, %s77
      %s94 = sphi 0, %s78
      %s100 = sphi 0, %s102
      %s103 = sphi 0, %s100
      %s104 = sphi 0, %s103
      %s120 = sphi 0, %s104
      %s126 = sphi 0, %s128
      %s129 = sphi 0, %s126
      %s130 = sphi 0, %s129
      %s146 = sphi 0, %s130
    $region4: #{tpu_custom_call.1} parent=1 // loop_header_branch
      %20 = sbr.rel (%p18) target = $region8
    $region5: #{tpu_custom_call.1} parent=1 // loop_body
      %s22 = ssub.s32 %s17, 1
      %s23 = ssub.s32 %s17, 2
      %s24 = sadd.s32 %s17, 1
      %s25 = ssub.s32 %s17, %s24
      %p26 = scmp.eq.s32.totalorder %s25, 0
      %s28 = sadd.s32 %s27, 1
      %s29 = scalar_select %p26, %s27, %s28
      %p32 = pneg %p26
      %p33 = scmp.eq.s32.totalorder %s17, 3
      %p34 = por %p32, %p33
      %p35 = scmp.ne.s32.totalorder %s27, %s30
      %p36 = scmp.eq.s32.totalorder %s17, 0
      %p37 = por %p35, %p36
      %p38 = scmp.ne.s32.totalorder %s27, %s30
      %p39 = scmp.eq.s32.totalorder %s22, 3
      %p40 = por %p38, %p39
      %p41 = scmp.ne.s32.totalorder %s30, %s31
      %p42 = scmp.eq.s32.totalorder %s22, 0
      %p43 = por %p41, %p42
      %p44 = scmp.ne.s32.totalorder %s30, %s31
      %p45 = scmp.eq.s32.totalorder %s23, 3
      %p46 = por %p44, %p45
      %p48 = scmp.ne.s32.totalorder %s31, %s47
      %p49 = scmp.eq.s32.totalorder %s23, 0
      %p50 = por %p48, %p49
      %s52 = sadd.s32 %s51, 1
      %p55 = scmp.eq.s32.totalorder %s17, 3
      %p56 = scmp.ne.s32.totalorder %s51, %s53
      %p57 = scmp.eq.s32.totalorder %s17, 0
      %p58 = por %p56, %p57
      %p59 = scmp.ne.s32.totalorder %s51, %s53
      %p60 = scmp.eq.s32.totalorder %s22, 3
      %p61 = por %p59, %p60
      %p62 = scmp.ne.s32.totalorder %s53, %s54
      %p63 = scmp.eq.s32.totalorder %s22, 0
      %p64 = por %p62, %p63
      %p65 = scmp.ne.s32.totalorder %s53, %s54
      %p66 = scmp.eq.s32.totalorder %s23, 3
      %p67 = por %p65, %p66
      %p69 = scmp.ne.s32.totalorder %s54, %s68
      %p70 = scmp.eq.s32.totalorder %s23, 0
      %p71 = por %p69, %p70
      %s72 = ssub.s32 %s17, %s24
      %p73 = scmp.eq.s32.totalorder %s72, 0
      %s75 = sadd.s32 %s74, 1
      %s76 = scalar_select %p73, %s74, %s75
      %p79 = pneg %p73
      %p80 = scmp.eq.s32.totalorder %s17, 3
      %p81 = por %p79, %p80
      %p82 = scmp.ne.s32.totalorder %s74, %s77
      %p83 = scmp.eq.s32.totalorder %s17, 0
      %p84 = por %p82, %p83
      %p85 = scmp.ne.s32.totalorder %s74, %s77
      %p86 = scmp.eq.s32.totalorder %s22, 3
      %p87 = por %p85, %p86
      %p88 = scmp.ne.s32.totalorder %s77, %s78
      %p89 = scmp.eq.s32.totalorder %s22, 0
      %p90 = por %p88, %p89
      %p91 = scmp.ne.s32.totalorder %s77, %s78
      %p92 = scmp.eq.s32.totalorder %s23, 3
      %p93 = por %p91, %p92
      %p95 = scmp.ne.s32.totalorder %s78, %s94
      %p96 = scmp.eq.s32.totalorder %s23, 0
      %p97 = por %p95, %p96
      %s98 = ssub.s32 %s17, %s24
      %p99 = scmp.eq.s32.totalorder %s98, 0
      %s101 = sadd.s32 %s100, 1
      %s102 = scalar_select %p99, %s100, %s101
      %p105 = pneg %p99
      %p106 = scmp.eq.s32.totalorder %s17, 3
      %p107 = por %p105, %p106
      %p108 = scmp.ne.s32.totalorder %s100, %s103
      %p109 = scmp.eq.s32.totalorder %s17, 0
      %p110 = por %p108, %p109
      %p111 = scmp.ne.s32.totalorder %s100, %s103
      %p112 = scmp.eq.s32.totalorder %s22, 3
      %p113 = por %p111, %p112
      %p114 = scmp.ne.s32.totalorder %s103, %s104
      %p115 = scmp.eq.s32.totalorder %s22, 0
      %p116 = por %p114, %p115
      %p117 = scmp.ne.s32.totalorder %s103, %s104
      %p118 = scmp.eq.s32.totalorder %s23, 3
      %p119 = por %p117, %p118
      %p121 = scmp.ne.s32.totalorder %s104, %s120
      %p122 = scmp.eq.s32.totalorder %s23, 0
      %p123 = por %p121, %p122
      %s124 = ssub.s32 %s17, %s24
      %p125 = scmp.eq.s32.totalorder %s124, 0
      %s127 = sadd.s32 %s126, 1
      %s128 = scalar_select %p125, %s126, %s127
      %p131 = pneg %p125
      %p132 = scmp.eq.s32.totalorder %s17, 3
      %p133 = por %p131, %p132
      %p134 = scmp.ne.s32.totalorder %s126, %s129
      %p135 = scmp.eq.s32.totalorder %s17, 0
      %p136 = por %p134, %p135
      %p137 = scmp.ne.s32.totalorder %s126, %s129
      %p138 = scmp.eq.s32.totalorder %s22, 3
      %p139 = por %p137, %p138
      %p140 = scmp.ne.s32.totalorder %s129, %s130
      %p141 = scmp.eq.s32.totalorder %s22, 0
      %p142 = por %p140, %p141
      %p143 = scmp.ne.s32.totalorder %s129, %s130
      %p144 = scmp.eq.s32.totalorder %s23, 3
      %p145 = por %p143, %p144
      %p147 = scmp.ne.s32.totalorder %s130, %s146
      %p148 = scmp.eq.s32.totalorder %s23, 0
      %p149 = por %p147, %p148
      %p150 = scmp.le.s32.totalorder 1, %s17
      %p151 = scmp.lt.s32.totalorder %s17, 5
      %p152 = pnand %p150, %p151
      %p153 = pneg %p152
      // Predicated region
      $region9: #{tpu_custom_call.1} parent=5 // pred_check
        _
      $region10: #{tpu_custom_call.1} parent=5 // pred_check_branch
        %155 = sbr.rel (%p152) target = $region12
      $region11: #{tpu_custom_call.1} parent=5 // pred_region
        %s156 = ssub.s32 %s17, 1
        // Predicated region
        $region13: #{tpu_custom_call.1} parent=11 // pred_check
          %p157 = pneg %p64
        $region14: #{tpu_custom_call.1} parent=11 // pred_check_branch
          %159 = sbr.rel (%p157) target = $region16
        $region15: #{tpu_custom_call.1} parent=11 // pred_region
          _
        $region16: #{tpu_custom_call.1} parent=11 // pred_fallthru
          _
      $region12: #{tpu_custom_call.1} parent=5 // pred_fallthru
        _
      %p160 = scmp.lt.s32.totalorder %s17, 4
      // Predicated region
      $region17: #{tpu_custom_call.1} parent=5 // pred_check
        %p161 = pneg %p160
      $region18: #{tpu_custom_call.1} parent=5 // pred_check_branch
        %163 = sbr.rel (%p161) target = $region20
      $region19: #{tpu_custom_call.1} parent=5 // pred_region
        // Predicated region
        $region21: #{tpu_custom_call.1} parent=19 // pred_check
          %p164 = pneg %p37
        $region22: #{tpu_custom_call.1} parent=19 // pred_check_branch
          %166 = sbr.rel (%p164) target = $region24
        $region23: #{tpu_custom_call.1} parent=19 // pred_region
          %s167 = smul.u32 16, %s17
          %p168 = scmp.lt.s32.totalorder %s167, 63
          %s169 = scalar_select %p168, %s167, 63
          %s170 = smul.addr %s169, 4
          %s171 = scalar_lea.vmem %s0, %s170
          %s172 = smul.u32 16, %s17
        $region24: #{tpu_custom_call.1} parent=19 // pred_fallthru
          _
      $region20: #{tpu_custom_call.1} parent=5 // pred_fallthru
        _
      %p173 = scmp.le.s32.totalorder 1, %s17
      %p174 = scmp.lt.s32.totalorder %s17, 5
      %p175 = pnand %p173, %p174
      %p176 = pneg %p175
      // Predicated region
      $region25: #{tpu_custom_call.1} parent=5 // pred_check
        _
      $region26: #{tpu_custom_call.1} parent=5 // pred_check_branch
        %178 = sbr.rel (%p175) target = $region28
      $region27: #{tpu_custom_call.1} parent=5 // pred_region
        %s179 = ssub.s32 %s17, 1
        %s180 = smul.u32 16, %s22
        %p181 = scmp.lt.s32.totalorder %s180, 63
        %s182 = scalar_select %p181, %s180, 63
        %s183 = smul.addr %s182, 4
        %s184 = scalar_lea.vmem %s0, %s183
        %p185 = pneg %p43
        %p186 = pneg %p40
        %p187 = pneg %p64
        %p188 = pneg %p61
        %p189 = pneg %p90
        %p190 = pneg %p87
        %s191 = sand.u32 %s77, 1
        %s192 = scalar_lea.sflag [#allocation3], %s191
        %s193 = sand.u32 %s77, 1
        %s194 = smul.addr %s193, 128
        %s195 = scalar_lea.vmem [#allocation2], %s194
        %p196 = pneg %p116
        %p197 = pneg %p113
        %s198 = sand.u32 %s22, 1
        %s199 = scalar_lea.sflag [#allocation5], %s198
        %s200 = sand.u32 %s103, 1
        %s201 = scalar_lea.vmem [#allocation4], %s200
        %p202 = pneg %p142
        %p203 = pneg %p139
        %s204 = sand.u32 %s22, 1
        %s205 = scalar_lea.sflag [#allocation5], %s204
        %s206 = sand.u32 %s129, 1
        %s207 = scalar_lea.vmem [#allocation6], %s206
        %s208 = smul.u32 16, %s22
        %p209 = scmp.lt.s32.totalorder %s208, 63
        %s210 = scalar_select %p209, %s208, 63
        %s211 = smul.addr %s210, 4
        %s212 = scalar_lea.vmem %s0, %s211
        %s213 = smul.u32 16, %s22
        %s214 = smul.u32 16, %s22
        %v216 = vld [vmem:[%s212] sm:$0xf]
        %v217 = vld [vmem:[%s212 + $0x4] sm:$0xf]
        %v218 = vld [vmem:[%s212 + $0x8] sm:$0xf]
        %v219 = vld [vmem:[%s212 + $0xc] sm:$0xf]
        %v220 = vld [vmem:[%s212 + $0x10] sm:$0xf]
        %v221 = vld [vmem:[%s212 + $0x14] sm:$0xf]
        %v222 = vld [vmem:[%s212 + $0x18] sm:$0xf]
        %v223 = vld [vmem:[%s212 + $0x1c] sm:$0xf]
        %v224 = vld [vmem:[%s212 + $0x20] sm:$0xf]
        %v225 = vld [vmem:[%s212 + $0x24] sm:$0xf]
        %v226 = vld [vmem:[%s212 + $0x28] sm:$0xf]
        %v227 = vld [vmem:[%s212 + $0x2c] sm:$0xf]
        %v228 = vld [vmem:[%s212 + $0x30] sm:$0xf]
        %v229 = vld [vmem:[%s212 + $0x34] sm:$0xf]
        %v230 = vld [vmem:[%s212 + $0x38] sm:$0xf]
        %v231 = vld [vmem:[%s212 + $0x3c] sm:$0xf]
        %v232 = vld [vmem:[%s1] sm:$0xf]
        %v233 = vld [vmem:[%s1 + $0x4] sm:$0xf]
        %v234 = vld [vmem:[%s1 + $0x8] sm:$0xf]
        %v235 = vld [vmem:[%s1 + $0xc] sm:$0xf]
        %v236 = vld [vmem:[%s1 + $0x10] sm:$0x3]
        %v253 = vunpack.c.l.b16 %v216
        %v254 = vunpack.c.l.b16 %v217
        %v255 = vunpack.c.l.b16 %v218
        %v256 = vunpack.c.l.b16 %v219
        %v257 = vunpack.c.l.b16 %v220
        %v258 = vunpack.c.l.b16 %v221
        %v259 = vunpack.c.l.b16 %v222
        %v260 = vunpack.c.l.b16 %v223
        %v261 = vunpack.c.l.b16 %v224
        %v262 = vunpack.c.l.b16 %v225
        %v263 = vunpack.c.l.b16 %v226
        %v264 = vunpack.c.l.b16 %v227
        %v265 = vunpack.c.l.b16 %v228
        %v266 = vunpack.c.l.b16 %v229
        %v267 = vunpack.c.l.b16 %v230
        %v268 = vunpack.c.l.b16 %v231
        %v269 = vpack.c.b16 %v254, %v253
        %v270 = vpack.c.b16 %v256, %v255
        %v271 = vpack.c.b16 %v258, %v257
        %v272 = vpack.c.b16 %v260, %v259
        %v273 = vpack.c.b16 %v262, %v261
        %v274 = vpack.c.b16 %v264, %v263
        %v275 = vpack.c.b16 %v266, %v265
        %v276 = vpack.c.b16 %v268, %v267
        %v282 = vunpack.c.l.b16 %v232
        %v283 = vunpack.c.l.b16 %v233
        %v284 = vunpack.c.l.b16 %v234
        %v285 = vunpack.c.l.b16 %v235
        %v286 = vunpack.c.l.b16 %v236
        %v287 = vpack.c.b16 %v283, %v282
        %v288 = vpack.c.b16 %v285, %v284
        %v289 = vpack.c.b16 %v286, %v286
        %vm292 = vcmask 293888
        %v294 = vsel %vm292, %v269, 0
        %v297 = vsel %vm292, %v270, 0
        %v300 = vsel %vm292, %v271, 0
        %v303 = vsel %vm292, %v272, 0
        %v306 = vsel %vm292, %v273, 0
        %v309 = vsel %vm292, %v274, 0
        %v312 = vsel %vm292, %v275, 0
        %v315 = vsel %vm292, %v276, 0
        %vm317 = vcmask 1041408
        %v319 = vsel %vm317, %v289, 0
        %321 = vmatprep.subr.bf16.mxu0 0
        %322 = vmatpush1.bf16.msra.mxu0 %v287
        %323 = vmatprep.subr.bf16.mxu0 0
        %324 = vmatpush1.bf16.msra.mxu0 %v288
        %325 = vmatprep.subr.bf16.mxu0 0
        %326 = vmatpush1.bf16.msra.mxu0 %v319
        %327 = vmatprep.subr.bf16.mxu0 0
        %328 = vmatpush1.bf16.msra.mxu0 0
        %329 = vmatprep.subr.bf16.mxu0 0
        %330 = vmatpush1.bf16.msra.mxu0 0
        %331 = vmatprep.subr.bf16.mxu0 0
        %332 = vmatpush1.bf16.msra.mxu0 0
        %333 = vmatprep.subr.bf16.mxu0 0
        %334 = vmatpush1.bf16.msra.mxu0 0
        %335 = vmatprep.subr.bf16.mxu0 0
        %336 = vmatpush1.bf16.msra.mxu0 0
        %337 = vmatprep.subr.bf16.mxu0 0
        %338 = vmatpush1.bf16.msra.mxu0 0
        %339 = vmatprep.subr.bf16.mxu0 0
        %340 = vmatpush1.bf16.msra.mxu0 0
        %341 = vmatprep.subr.bf16.mxu0 0
        %342 = vmatpush1.bf16.msra.mxu0 0
        %343 = vmatprep.subr.bf16.mxu0 0
        %344 = vmatpush1.bf16.msra.mxu0 0
        %345 = vmatprep.subr.bf16.mxu0 0
        %346 = vmatpush1.bf16.msra.mxu0 0
        %347 = vmatprep.subr.bf16.mxu0 0
        %348 = vmatpush1.bf16.msra.mxu0 0
        %349 = vmatprep.subr.bf16.mxu0 0
        %350 = vmatpush1.bf16.msra.mxu0 0
        %351 = vmatprep.subr.bf16.mxu0 0
        %352 = vmatpush1.bf16.msra.mxu0 0
        %353 = vmatprep.mubr.bf16.mxu0 0
        %354 = vmatmul.mubr.bf16.gmra.mrb[0].mxu0 %v294
        %v355 = vpop.f32.mrb[0].mxu0
        %v356 = vadd.f32 0.0, %v355
        %v357 = vpop.f32.mrb[0].mxu0
        %v358 = vpop.f32.mrb[0].mxu0
        %v359 = vadd.f32 0.0, %v358
        %v360 = vpop.f32.mrb[0].mxu0
        %361 = vmatprep.mubr.bf16.mxu0 0
        %362 = vmatmul.mubr.bf16.gmra.mrb[0].mxu0 %v297
        %v363 = vpop.f32.mrb[0].mxu0
        %v364 = vadd.f32 0.0, %v363
        %v365 = vpop.f32.mrb[0].mxu0
        %v366 = vpop.f32.mrb[0].mxu0
        %v367 = vadd.f32 0.0, %v366
        %v368 = vpop.f32.mrb[0].mxu0
        %369 = vmatprep.mubr.bf16.mxu0 0
        %370 = vmatmul.mubr.bf16.gmra.mrb[0].mxu0 %v300
        %v371 = vpop.f32.mrb[0].mxu0
        %v372 = vadd.f32 0.0, %v371
        %v373 = vpop.f32.mrb[0].mxu0
        %v374 = vpop.f32.mrb[0].mxu0
        %v375 = vadd.f32 0.0, %v374
        %v376 = vpop.f32.mrb[0].mxu0
        %377 = vmatprep.mubr.bf16.mxu0 0
        %378 = vmatmul.mubr.bf16.gmra.mrb[0].mxu0 %v303
        %v379 = vpop.f32.mrb[0].mxu0
        %v380 = vadd.f32 0.0, %v379
        %v381 = vpop.f32.mrb[0].mxu0
        %v382 = vpop.f32.mrb[0].mxu0
        %v383 = vadd.f32 0.0, %v382
        %v384 = vpop.f32.mrb[0].mxu0
        %385 = vmatprep.mubr.bf16.mxu0 0
        %386 = vmatmul.mubr.bf16.gmra.mrb[0].mxu0 %v306
        %v387 = vpop.f32.mrb[0].mxu0
        %v388 = vadd.f32 0.0, %v387
        %v389 = vpop.f32.mrb[0].mxu0
        %v390 = vpop.f32.mrb[0].mxu0
        %v391 = vadd.f32 0.0, %v390
        %v392 = vpop.f32.mrb[0].mxu0
        %393 = vmatprep.mubr.bf16.mxu0 0
        %394 = vmatmul.mubr.bf16.gmra.mrb[0].mxu0 %v309
        %v395 = vpop.f32.mrb[0].mxu0
        %v396 = vadd.f32 0.0, %v395
        %v397 = vpop.f32.mrb[0].mxu0
        %v398 = vpop.f32.mrb[0].mxu0
        %v399 = vadd.f32 0.0, %v398
        %v400 = vpop.f32.mrb[0].mxu0
        %401 = vmatprep.mubr.bf16.mxu0 0
        %402 = vmatmul.mubr.bf16.gmra.mrb[0].mxu0 %v312
        %v403 = vpop.f32.mrb[0].mxu0
        %v404 = vadd.f32 0.0, %v403
        %v405 = vpop.f32.mrb[0].mxu0
        %v406 = vpop.f32.mrb[0].mxu0
        %v407 = vadd.f32 0.0, %v406
        %v408 = vpop.f32.mrb[0].mxu0
        %409 = vmatprep.mubr.bf16.mxu0 0
        %410 = vmatmul.mubr.bf16.gmra.mrb[0].mxu0 %v315
        %v411 = vpop.f32.mrb[0].mxu0
        %v412 = vadd.f32 0.0, %v411
        %v413 = vpop.f32.mrb[0].mxu0
        %v414 = vpop.f32.mrb[0].mxu0
        %v415 = vadd.f32 0.0, %v414
        %v416 = vpop.f32.mrb[0].mxu0
        %417 = vdwg.mxu0
        %418 = vst [vmem:[%s195] sm:$0xff] %v356
        %419 = vst [vmem:[%s195 + $0x8] sm:$0xff] %v359
        %420 = vst [vmem:[%s195 + $0x10] sm:$0xff] %v364
        %421 = vst [vmem:[%s195 + $0x18] sm:$0xff] %v367
        %422 = vst [vmem:[%s195 + $0x20] sm:$0xff] %v372
        %423 = vst [vmem:[%s195 + $0x28] sm:$0xff] %v375
        %424 = vst [vmem:[%s195 + $0x30] sm:$0xff] %v380
        %425 = vst [vmem:[%s195 + $0x38] sm:$0xff] %v383
        %426 = vst [vmem:[%s195 + $0x40] sm:$0xff] %v388
        %427 = vst [vmem:[%s195 + $0x48] sm:$0xff] %v391
        %428 = vst [vmem:[%s195 + $0x50] sm:$0xff] %v396
        %429 = vst [vmem:[%s195 + $0x58] sm:$0xff] %v399
        %430 = vst [vmem:[%s195 + $0x60] sm:$0xff] %v404
        %431 = vst [vmem:[%s195 + $0x68] sm:$0xff] %v407
        %432 = vst [vmem:[%s195 + $0x70] sm:$0xff] %v412
        %433 = vst [vmem:[%s195 + $0x78] sm:$0xff] %v415
        %v434 = vadd.f32 %v356, %v359
        %v435 = vadd.f32 %v434, %v364
        %v436 = vadd.f32 %v435, %v367
        %v437 = vadd.f32 %v436, %v372
        %v438 = vadd.f32 %v437, %v375
        %v439 = vadd.f32 %v438, %v380
        %v440 = vadd.f32 %v439, %v383
        %v441 = vadd.f32 %v440, %v388
        %v442 = vadd.f32 %v441, %v391
        %v443 = vadd.f32 %v442, %v396
        %v444 = vadd.f32 %v443, %v399
        %v445 = vadd.f32 %v444, %v404
        %v446 = vadd.f32 %v445, %v407
        %v447 = vadd.f32 %v446, %v412
        %v448 = vadd.f32 %v447, %v415
        %v449 = vrot.slane %v448, 4
        %v450 = vadd.f32 %v448, %v449
        %v451 = vrot.slane %v450, 2
        %v452 = vadd.f32 %v450, %v451
        %v453 = vrot.slane %v452, 1
        %v454 = vadd.f32 %v452, %v453
        %455 = vst [vmem:[%s201] sm:$0x1] %v454
        %v456 = vmul.f32 %v356, %v356
        %v457 = vmul.f32 %v359, %v359
        %v458 = vmul.f32 %v364, %v364
        %v459 = vmul.f32 %v367, %v367
        %v460 = vmul.f32 %v372, %v372
        %v461 = vmul.f32 %v375, %v375
        %v462 = vmul.f32 %v380, %v380
        %v463 = vmul.f32 %v383, %v383
        %v464 = vmul.f32 %v388, %v388
        %v465 = vmul.f32 %v391, %v391
        %v466 = vmul.f32 %v396, %v396
        %v467 = vmul.f32 %v399, %v399
        %v468 = vmul.f32 %v404, %v404
        %v469 = vmul.f32 %v407, %v407
        %v470 = vmul.f32 %v412, %v412
        %v471 = vmul.f32 %v415, %v415
        %v472 = vadd.f32 %v456, %v457
        %v473 = vadd.f32 %v472, %v458
        %v474 = vadd.f32 %v473, %v459
        %v475 = vadd.f32 %v474, %v460
        %v476 = vadd.f32 %v475, %v461
        %v477 = vadd.f32 %v476, %v462
        %v478 = vadd.f32 %v477, %v463
        %v479 = vadd.f32 %v478, %v464
        %v480 = vadd.f32 %v479, %v465
        %v481 = vadd.f32 %v480, %v466
        %v482 = vadd.f32 %v481, %v467
        %v483 = vadd.f32 %v482, %v468
        %v484 = vadd.f32 %v483, %v469
        %v485 = vadd.f32 %v484, %v470
        %v486 = vadd.f32 %v485, %v471
        %v487 = vrot.slane %v486, 4
        %v488 = vadd.f32 %v486, %v487
        %v489 = vrot.slane %v488, 2
        %v490 = vadd.f32 %v488, %v489
        %v491 = vrot.slane %v490, 1
        %v492 = vadd.f32 %v490, %v491
        %493 = vst [vmem:[%s207] sm:$0x1] %v492
        %s494 = sand.u32 %s77, 1
        %s495 = scalar_lea.sflag [#allocation3], %s494
        %s496 = sand.u32 %s77, 1
        %s497 = smul.addr %s496, 128
        %s498 = scalar_lea.vmem [#allocation2], %s497
        %s499 = sand.u32 %s22, 1
        %s500 = scalar_lea.sflag [#allocation5], %s499
        %s501 = sand.u32 %s103, 1
        %s502 = scalar_lea.vmem [#allocation4], %s501
        %s503 = sand.u32 %s22, 1
        %s504 = scalar_lea.sflag [#allocation5], %s503
        %s505 = sand.u32 %s129, 1
        %s506 = scalar_lea.vmem [#allocation6], %s505
        // Predicated region
        $region29: #{tpu_custom_call.1} parent=27 // pred_check
          %p507 = pneg %p87
        $region30: #{tpu_custom_call.1} parent=27 // pred_check_branch
          %509 = sbr.rel (%p507) target = $region32
        $region31: #{tpu_custom_call.1} parent=27 // pred_region
          %s510 = smul.u32 16, %s22
          %s512 = ssub.s32 2048, 2048
          %513 = vsyncadd %s495, %s512
          %s514 = smul.addr %s510, 128
          %s515 = scalar_lea.hbm %s2, %s514
          %s516 = sshll.u32 %s498, 4
          %s517 = int_to_ptr.vmem [resolvable:$true] %s516
          %522 = dma.vmem_to_hbm [thread:$0]  %s517, 2048, %s515, %s495, 128, 128, 8
        $region32: #{tpu_custom_call.1} parent=27 // pred_fallthru
          _
        // Predicated region
        $region33: #{tpu_custom_call.1} parent=27 // pred_check
          %p523 = pneg %p113
        $region34: #{tpu_custom_call.1} parent=27 // pred_check_branch
          %525 = sbr.rel (%p523) target = $region36
        $region35: #{tpu_custom_call.1} parent=27 // pred_region
          %s527 = ssub.s32 16, 16
          %528 = vsyncadd %s500, %s527
          %s529 = smul.addr %s22, 16
          %s530 = scalar_lea.hbm %s3, %s529
          %s532 = sshll.u32 %s502, 4
          %s533 = int_to_ptr.vmem [resolvable:$true] %s532
          %535 = dma.vmem_to_hbm [thread:$0]  %s533, 16, %s530, %s500
        $region36: #{tpu_custom_call.1} parent=27 // pred_fallthru
          _
        // Predicated region
        $region37: #{tpu_custom_call.1} parent=27 // pred_check
          %p536 = pneg %p139
        $region38: #{tpu_custom_call.1} parent=27 // pred_check_branch
          %538 = sbr.rel (%p536) target = $region40
        $region39: #{tpu_custom_call.1} parent=27 // pred_region
          %s540 = ssub.s32 16, 16
          %541 = vsyncadd %s504, %s540
          %s542 = smul.addr %s22, 16
          %s543 = scalar_lea.hbm %s4, %s542
          %s545 = sshll.u32 %s506, 4
          %s546 = int_to_ptr.vmem [resolvable:$true] %s545
          %548 = dma.vmem_to_hbm [thread:$0]  %s546, 16, %s543, %s504
        $region40: #{tpu_custom_call.1} parent=27 // pred_fallthru
          _
      $region28: #{tpu_custom_call.1} parent=5 // pred_fallthru
        _
      %p549 = scmp.le.s32.totalorder 2, %s17
      // Predicated region
      $region41: #{tpu_custom_call.1} parent=5 // pred_check
        %p550 = pneg %p549
      $region42: #{tpu_custom_call.1} parent=5 // pred_check_branch
        %552 = sbr.rel (%p550) target = $region44
      $region43: #{tpu_custom_call.1} parent=5 // pred_region
        %s553 = ssub.s32 %s17, 2
        // Predicated region
        $region45: #{tpu_custom_call.1} parent=43 // pred_check
          %p554 = pneg %p93
        $region46: #{tpu_custom_call.1} parent=43 // pred_check_branch
          %556 = sbr.rel (%p554) target = $region48
        $region47: #{tpu_custom_call.1} parent=43 // pred_region
          %s557 = sand.u32 %s78, 1
          %s558 = scalar_lea.sflag [#allocation3], %s557
          %s559 = sand.u32 %s78, 1
          %s560 = smul.addr %s559, 128
          %s561 = scalar_lea.vmem [#allocation2], %s560
          %562 = dma.done %s558, 2048
        $region48: #{tpu_custom_call.1} parent=43 // pred_fallthru
          _
        // Predicated region
        $region49: #{tpu_custom_call.1} parent=43 // pred_check
          %p563 = pneg %p119
        $region50: #{tpu_custom_call.1} parent=43 // pred_check_branch
          %565 = sbr.rel (%p563) target = $region52
        $region51: #{tpu_custom_call.1} parent=43 // pred_region
          %s566 = sand.u32 %s23, 1
          %s567 = scalar_lea.sflag [#allocation5], %s566
          %s568 = sand.u32 %s104, 1
          %s569 = scalar_lea.vmem [#allocation4], %s568
          %570 = dma.done %s567, 16
        $region52: #{tpu_custom_call.1} parent=43 // pred_fallthru
          _
        // Predicated region
        $region53: #{tpu_custom_call.1} parent=43 // pred_check
          %p571 = pneg %p145
        $region54: #{tpu_custom_call.1} parent=43 // pred_check_branch
          %573 = sbr.rel (%p571) target = $region56
        $region55: #{tpu_custom_call.1} parent=43 // pred_region
          %s574 = sand.u32 %s23, 1
          %s575 = scalar_lea.sflag [#allocation5], %s574
          %s576 = sand.u32 %s130, 1
          %s577 = scalar_lea.vmem [#allocation6], %s576
          %578 = dma.done %s575, 16
        $region56: #{tpu_custom_call.1} parent=43 // pred_fallthru
          _
      $region44: #{tpu_custom_call.1} parent=5 // pred_fallthru
        _
    $region6: #{tpu_custom_call.1} parent=1 // loop_footer
      %s21 = sadd.s32 1, %s17
    $region7: #{tpu_custom_call.1} parent=1 // loop_footer_branch
      %16 = sbr.rel target = $region3
    $region8: #{tpu_custom_call.1} parent=1 // loop_exit
      _
    %579 = vsyncpa [#allocation3], 1
    %s580 = scalar_lea.sflag [#allocation3], 1
    %581 = vsyncpa %s580, 1
    %582 = vsyncpa [#allocation5], 1
    %s583 = scalar_lea.sflag [#allocation5], 1
    %584 = vsyncpa %s583, 1

</llo_original>
